<compile_context>
chip_gen: v6e
topology: v6e:2x2x1
jax: 0.10.0
libtpu: 0.0.40
codegen_flags: <defaults>
</compile_context>

<pallas_src>
import math

import jax
import jax.numpy as jnp
from jax.experimental import pallas as pl
from jax.experimental.pallas import tpu as pltpu


def _attention_adapter_kernel(
    h_ref,    # (1, C, HW)  current batch's features, channels on sublanes, spatial on lanes
    z_ref,    # (1, 1, d_z) current batch's global context vector
    wqT_ref,  # (d_z, C)    W_q pre-transposed in the wrapper
    bq_ref,   # (1, C)
    wk_ref,   # (C, C)      PyTorch (out, in) layout, used as-is by the query fold
    bk_ref,   # (C, 1)
    wv_ref,   # (C, C)      used in column form (no transpose)
    bv_ref,   # (C, 1)
    wo_ref,   # (C, C)      used in column form (no transpose)
    bo_ref,   # (C, 1)
    o_ref,    # (1, C, HW)
):
    h = h_ref[0]                                   # (C, HW)
    z = z_ref[0]                                   # (1, d_z)
    C, HW = h.shape
    inv_dk = 1.0 / math.sqrt(float(C))

    # q = z @ Wq^T + bq   (row form; weight pre-transposed -> plain MXU dot)
    q = jnp.dot(z, wqT_ref[...], preferred_element_type=jnp.float32) + bq_ref[...]      # (1, C)

    # Fold the single query through the K projection:
    #   scores_p = ( sum_i (q @ Wk)_i * h[i, p] + q . bk ) / sqrt(C)
    s = jnp.dot(q, wk_ref[...], preferred_element_type=jnp.float32)                     # (1, C)
    qb = jnp.dot(q, bk_ref[...], preferred_element_type=jnp.float32)                    # (1, 1)
    scores = (jnp.dot(s, h, preferred_element_type=jnp.float32) + qb) * inv_dk          # (1, HW)

    # Numerically-stable softmax over HW (lane-major row; normalization deferred below).
    m = jnp.max(scores, axis=-1, keepdims=True)                                         # (1, 1)
    e = jnp.exp(scores - m)                                                              # (1, HW)
    denom = jnp.sum(e, axis=-1, keepdims=True)                                           # (1, 1)
    inv_denom = pl.reciprocal(denom, approx=True)                                        # EUP slot

    # pooled = h @ attn^T : MXU matvec contracting the HW (lane) axis of both operands.
    pooled = jax.lax.dot_general(
        h, e, dimension_numbers=(((1,), (1,)), ((), ())),
        preferred_element_type=jnp.float32)                                              # (C, 1)
    pooled = pooled * inv_denom                                                          # normalize C values

    # Since sum(attn) == 1:  ctx = Wv @ pooled + bv ;  out = Wo @ ctx + bo   (column form)
    ctx = jnp.dot(wv_ref[...], pooled, preferred_element_type=jnp.float32) + bv_ref[...]  # (C, 1)
    ctx = jnp.dot(wo_ref[...], ctx, preferred_element_type=jnp.float32) + bo_ref[...]     # (C, 1)

    # refined_h = h + context broadcast over all spatial positions (lane broadcast).
    o_ref[0] = (h + ctx).astype(o_ref.dtype)


def attention_adapter(h, z, params):
    """h: (B, C, H, W) float32, z: (B, d_z) float32. Returns (B, C, H, W)."""
    B, C, H, W = h.shape
    d_z = z.shape[-1]
    HW = H * W

    # Free layout glue: NCHW -> (B, C, HW) is a pure reshape (no transpose, no extra HBM pass).
    h_chw = h.reshape(B, C, HW)
    z3 = z.reshape(B, 1, d_z)

    # Pre-arrange weights once so the kernel never transposes.
    wqT = params["wq"].T                       # (d_z, C)
    bq = params["bq"].reshape(1, C)
    wk = params["wk"]                          # (C, C) as stored (query fold)
    bk = params["bk"].reshape(C, 1)
    wv = params["wv"]                          # (C, C) column-form application
    bv = params["bv"].reshape(C, 1)
    wo = params["wo"]
    bo = params["bo"].reshape(C, 1)

    full = lambda shape: pl.BlockSpec(shape, lambda b: (0,) * len(shape))

    # Explicit VMEM budget: double-buffered h in/out + z + (conservatively double-buffered)
    # weights, with headroom; clamp to a floor well under every generation's scoped default.
    itemsize = jnp.dtype(h.dtype).itemsize
    block_bytes = itemsize * (
        4 * C * HW                                   # 2x h-in + 2x out blocks
        + 2 * d_z                                    # z block
        + 2 * (d_z * C + 3 * C * C + 4 * C)          # weights + biases
    )
    vmem_limit = int(max(2 * block_bytes, 16 * 1024 * 1024))

    out_chw = pl.pallas_call(
        _attention_adapter_kernel,
        out_shape=jax.ShapeDtypeStruct((B, C, HW), h.dtype),
        grid_spec=pltpu.PrefetchScalarGridSpec(
            num_scalar_prefetch=0,
            grid=(B,),
            in_specs=[
                pl.BlockSpec((1, C, HW), lambda b: (b, 0, 0)),    # h (B, C, HW)
                pl.BlockSpec((1, 1, d_z), lambda b: (b, 0, 0)),   # z (B, 1, d_z)
                full((d_z, C)), full((1, C)),                     # W_q^T, b_q
                full((C, C)), full((C, 1)),                       # W_k,   b_k
                full((C, C)), full((C, 1)),                       # W_v,   b_v
                full((C, C)), full((C, 1)),                       # W_o,   b_o
            ],
            out_specs=pl.BlockSpec((1, C, HW), lambda b: (b, 0, 0)),
        ),
        compiler_params=pltpu.CompilerParams(
            dimension_semantics=("parallel",),
            vmem_limit_bytes=vmem_limit,
        ),
    )(h_chw, z3, wqT, bq, wk, bk, wv, bv, wo, bo)

    # Free reshape back to NCHW.
    return out_chw.reshape(B, C, H, W)


def reference_attention_adapter(h, z, params):
    """Pure-JAX reference mirroring the PyTorch forward."""
    B, C, H, W = h.shape
    h_r = jnp.transpose(h, (0, 2, 3, 1)).reshape(B, H * W, C)
    Q = (z @ params["wq"].T + params["bq"])[:, None, :]                 # (B,1,C)
    K = h_r @ params["wk"].T + params["bk"]                             # (B,HW,C)
    V = h_r @ params["wv"].T + params["bv"]
    scores = jnp.einsum("bqc,bkc->bqk", Q, K) / (C ** 0.5)
    w = jax.nn.softmax(scores, axis=-1)
    ctx = jnp.einsum("bqk,bkc->bqc", w, V)
    ctx = (ctx @ params["wo"].T + params["bo"])[:, 0, :]                # (B,C)
    return h + ctx[:, :, None, None]


if __name__ == "__main__":
    B, C, H, W, d_z = 2, 4, 16, 16, 32

    key = jax.random.PRNGKey(0)
    keys = jax.random.split(key, 10)

    params = {
        "wq": 0.1 * jax.random.normal(keys[0], (C, d_z), jnp.float32),
        "bq": 0.1 * jax.random.normal(keys[1], (C,), jnp.float32),
        "wk": 0.1 * jax.random.normal(keys[2], (C, C), jnp.float32),
        "bk": 0.1 * jax.random.normal(keys[3], (C,), jnp.float32),
        "wv": 0.1 * jax.random.normal(keys[4], (C, C), jnp.float32),
        "bv": 0.1 * jax.random.normal(keys[5], (C,), jnp.float32),
        "wo": 0.1 * jax.random.normal(keys[6], (C, C), jnp.float32),
        "bo": 0.1 * jax.random.normal(keys[7], (C,), jnp.float32),
    }

    h = jax.random.normal(keys[8], (B, C, H, W), jnp.float32)
    z = jax.random.normal(keys[9], (B, d_z), jnp.float32)

    out = attention_adapter(h, z, params)
    out = jax.block_until_ready(out)

    ref = reference_attention_adapter(h, z, params)
    assert out.shape == (B, C, H, W)
    # Tolerance 1e-3: covers the EUP approx reciprocal in the softmax normalizer and the
    # reassociated (folded) projection order; any real bug is orders of magnitude larger.
    assert jnp.allclose(out, ref, rtol=1e-3, atol=1e-3), "mismatch vs JAX reference"

    print("KERNEL_OK")
</pallas_src>

<mosaic_0001>
module attributes {stable_mosaic.version = 11 : i64} {
  func.func @_attention_adapter_kernel(%arg0: i32, %arg1: memref<1x4x256xf32, #tpu.memory_space<vmem>>, %arg2: memref<1x1x32xf32, #tpu.memory_space<vmem>>, %arg3: memref<32x4xf32, #tpu.memory_space<vmem>>, %arg4: memref<1x4xf32, #tpu.memory_space<vmem>>, %arg5: memref<4x4xf32, #tpu.memory_space<vmem>>, %arg6: memref<4x1xf32, #tpu.memory_space<vmem>>, %arg7: memref<4x4xf32, #tpu.memory_space<vmem>>, %arg8: memref<4x1xf32, #tpu.memory_space<vmem>>, %arg9: memref<4x4xf32, #tpu.memory_space<vmem>>, %arg10: memref<4x1xf32, #tpu.memory_space<vmem>>, %arg11: memref<1x4x256xf32, #tpu.memory_space<vmem>>) attributes {dimension_semantics = [#tpu.dimension_semantics<parallel>], iteration_bounds = array<i64: 2>, scalar_prefetch = 0 : i64, scratch_operands = 0 : i64, tpu.core_type = #tpu.core_type<tc>, window_params = [{transform_indices = @transform_0, window_bounds = array<i64: 1, 4, 256>}, {transform_indices = @transform_1, window_bounds = array<i64: 1, 1, 32>}, {pipeline_mode = #tpu.pipeline_mode<synchronous>, transform_indices = @transform_2, window_bounds = array<i64: 32, 4>}, {pipeline_mode = #tpu.pipeline_mode<synchronous>, transform_indices = @transform_3, window_bounds = array<i64: 1, 4>}, {pipeline_mode = #tpu.pipeline_mode<synchronous>, transform_indices = @transform_4, window_bounds = array<i64: 4, 4>}, {pipeline_mode = #tpu.pipeline_mode<synchronous>, transform_indices = @transform_5, window_bounds = array<i64: 4, 1>}, {pipeline_mode = #tpu.pipeline_mode<synchronous>, transform_indices = @transform_6, window_bounds = array<i64: 4, 4>}, {pipeline_mode = #tpu.pipeline_mode<synchronous>, transform_indices = @transform_7, window_bounds = array<i64: 4, 1>}, {pipeline_mode = #tpu.pipeline_mode<synchronous>, transform_indices = @transform_8, window_bounds = array<i64: 4, 4>}, {pipeline_mode = #tpu.pipeline_mode<synchronous>, transform_indices = @transform_9, window_bounds = array<i64: 4, 1>}, {transform_indices = @transform_10, window_bounds = array<i64: 1, 4, 256>}]} {
    %c0 = arith.constant 0 : index
    %c0_0 = arith.constant 0 : index
    %c0_1 = arith.constant 0 : index
    %0 = vector.load %arg1[%c0, %c0_0, %c0_1] : memref<1x4x256xf32, #tpu.memory_space<vmem>>, vector<1x4x256xf32>
    %1 = vector.shape_cast %0 : vector<1x4x256xf32> to vector<4x256xf32>
    %c0_2 = arith.constant 0 : index
    %c0_3 = arith.constant 0 : index
    %c0_4 = arith.constant 0 : index
    %2 = vector.load %arg2[%c0_2, %c0_3, %c0_4] : memref<1x1x32xf32, #tpu.memory_space<vmem>>, vector<1x1x32xf32>
    %3 = vector.shape_cast %2 : vector<1x1x32xf32> to vector<1x32xf32>
    %c0_5 = arith.constant 0 : index
    %c0_6 = arith.constant 0 : index
    %4 = vector.load %arg3[%c0_5, %c0_6] : memref<32x4xf32, #tpu.memory_space<vmem>>, vector<32x4xf32>
    %cst = arith.constant dense<0.000000e+00> : vector<1x4xf32>
    %5 = tpu.matmul %3, %4, %cst {dimension_numbers = #tpu.dot_dimension_numbers<[1], [0], [0], [1], [0, 0, 1, 1], [], []>} : vector<1x32xf32>, vector<32x4xf32>, vector<1x4xf32> -> vector<1x4xf32>
    %c0_7 = arith.constant 0 : index
    %c0_8 = arith.constant 0 : index
    %6 = vector.load %arg4[%c0_7, %c0_8] : memref<1x4xf32, #tpu.memory_space<vmem>>, vector<1x4xf32>
    %7 = arith.addf %5, %6 : vector<1x4xf32>
    %c0_9 = arith.constant 0 : index
    %c0_10 = arith.constant 0 : index
    %8 = vector.load %arg5[%c0_9, %c0_10] : memref<4x4xf32, #tpu.memory_space<vmem>>, vector<4x4xf32>
    %cst_11 = arith.constant dense<0.000000e+00> : vector<1x4xf32>
    %9 = tpu.matmul %7, %8, %cst_11 {dimension_numbers = #tpu.dot_dimension_numbers<[1], [0], [0], [1], [0, 0, 1, 1], [], []>} : vector<1x4xf32>, vector<4x4xf32>, vector<1x4xf32> -> vector<1x4xf32>
    %c0_12 = arith.constant 0 : index
    %c0_13 = arith.constant 0 : index
    %10 = vector.load %arg6[%c0_12, %c0_13] : memref<4x1xf32, #tpu.memory_space<vmem>>, vector<4x1xf32>
    %cst_14 = arith.constant dense<0.000000e+00> : vector<1x1xf32>
    %11 = tpu.matmul %7, %10, %cst_14 {dimension_numbers = #tpu.dot_dimension_numbers<[1], [0], [0], [1], [0, 0, 1, 1], [], []>} : vector<1x4xf32>, vector<4x1xf32>, vector<1x1xf32> -> vector<1x1xf32>
    %cst_15 = arith.constant dense<0.000000e+00> : vector<1x256xf32>
    %12 = tpu.matmul %9, %1, %cst_15 {dimension_numbers = #tpu.dot_dimension_numbers<[1], [0], [0], [1], [0, 0, 1, 1], [], []>} : vector<1x4xf32>, vector<4x256xf32>, vector<1x256xf32> -> vector<1x256xf32>
    %13 = vector.broadcast %11 : vector<1x1xf32> to vector<1x256xf32>
    %14 = arith.addf %12, %13 : vector<1x256xf32>
    %cst_16 = arith.constant 5.000000e-01 : f32
    %15 = vector.broadcast %cst_16 : f32 to vector<1x256xf32>
    %16 = arith.mulf %14, %15 : vector<1x256xf32>
    %cst_17 = arith.constant dense<0xFF800000> : vector<1xf32>
    %17 = vector.multi_reduction <maximumf>, %16, %cst_17 [1] : vector<1x256xf32> to vector<1xf32>
    %18 = vector.shape_cast %17 : vector<1xf32> to vector<1x1xf32>
    %19 = vector.broadcast %18 : vector<1x1xf32> to vector<1x256xf32>
    %20 = arith.subf %16, %19 : vector<1x256xf32>
    %21 = math.exp %20 : vector<1x256xf32>
    %cst_18 = arith.constant dense<0.000000e+00> : vector<1xf32>
    %22 = vector.multi_reduction <add>, %21, %cst_18 [1] : vector<1x256xf32> to vector<1xf32>
    %23 = vector.shape_cast %22 : vector<1xf32> to vector<1x1xf32>
    %24 = tpu.reciprocal %23 {approx = true} : vector<1x1xf32> -> vector<1x1xf32>
    %cst_19 = arith.constant dense<0.000000e+00> : vector<4x1xf32>
    %25 = tpu.matmul %1, %21, %cst_19 {dimension_numbers = #tpu.dot_dimension_numbers<[1], [1], [0], [0], [0, 0, 1, 0], [], []>} : vector<4x256xf32>, vector<1x256xf32>, vector<4x1xf32> -> vector<4x1xf32>
    %26 = vector.broadcast %24 : vector<1x1xf32> to vector<4x1xf32>
    %27 = arith.mulf %25, %26 : vector<4x1xf32>
    %c0_20 = arith.constant 0 : index
    %c0_21 = arith.constant 0 : index
    %28 = vector.load %arg7[%c0_20, %c0_21] : memref<4x4xf32, #tpu.memory_space<vmem>>, vector<4x4xf32>
    %cst_22 = arith.constant dense<0.000000e+00> : vector<4x1xf32>
    %29 = tpu.matmul %28, %27, %cst_22 {dimension_numbers = #tpu.dot_dimension_numbers<[1], [0], [0], [1], [0, 0, 1, 1], [], []>} : vector<4x4xf32>, vector<4x1xf32>, vector<4x1xf32> -> vector<4x1xf32>
    %c0_23 = arith.constant 0 : index
    %c0_24 = arith.constant 0 : index
    %30 = vector.load %arg8[%c0_23, %c0_24] : memref<4x1xf32, #tpu.memory_space<vmem>>, vector<4x1xf32>
    %31 = arith.addf %29, %30 : vector<4x1xf32>
    %c0_25 = arith.constant 0 : index
    %c0_26 = arith.constant 0 : index
    %32 = vector.load %arg9[%c0_25, %c0_26] : memref<4x4xf32, #tpu.memory_space<vmem>>, vector<4x4xf32>
    %cst_27 = arith.constant dense<0.000000e+00> : vector<4x1xf32>
    %33 = tpu.matmul %32, %31, %cst_27 {dimension_numbers = #tpu.dot_dimension_numbers<[1], [0], [0], [1], [0, 0, 1, 1], [], []>} : vector<4x4xf32>, vector<4x1xf32>, vector<4x1xf32> -> vector<4x1xf32>
    %c0_28 = arith.constant 0 : index
    %c0_29 = arith.constant 0 : index
    %34 = vector.load %arg10[%c0_28, %c0_29] : memref<4x1xf32, #tpu.memory_space<vmem>>, vector<4x1xf32>
    %35 = arith.addf %33, %34 : vector<4x1xf32>
    %36 = vector.broadcast %35 : vector<4x1xf32> to vector<4x256xf32>
    %37 = arith.addf %1, %36 : vector<4x256xf32>
    %c0_30 = arith.constant 0 : index
    %c0_31 = arith.constant 0 : index
    %c0_32 = arith.constant 0 : index
    %38 = vector.load %arg11[%c0_30, %c0_31, %c0_32] : memref<1x4x256xf32, #tpu.memory_space<vmem>>, vector<1x4x256xf32>
    %39 = vector.shape_cast %38 : vector<1x4x256xf32> to vector<4x256xf32>
    %40 = vector.shape_cast %37 : vector<4x256xf32> to vector<1x4x256xf32>
    tpu.vector_store %arg11[%c0_30, %c0_31, %c0_32], %40 {strides = array<i32>} : memref<1x4x256xf32, #tpu.memory_space<vmem>>, vector<1x4x256xf32>,
    return
  }
  func.func @transform_0(%arg0: i32) -> (i32, i32, i32) {
    %c0_i32 = arith.constant 0 : i32
    %c0_i32_0 = arith.constant 0 : i32
    %c0_i32_1 = arith.constant 0 : i32
    return %arg0, %c0_i32, %c0_i32_0 : i32, i32, i32
  }
  func.func @transform_1(%arg0: i32) -> (i32, i32, i32) {
    %c0_i32 = arith.constant 0 : i32
    %c0_i32_0 = arith.constant 0 : i32
    %c0_i32_1 = arith.constant 0 : i32
    return %arg0, %c0_i32, %c0_i32_0 : i32, i32, i32
  }
  func.func @transform_2(%arg0: i32) -> (i32, i32) {
    %c0_i32 = arith.constant 0 : i32
    %c0_i32_0 = arith.constant 0 : i32
    %c0_i32_1 = arith.constant 0 : i32
    return %c0_i32, %c0_i32_0 : i32, i32
  }
  func.func @transform_3(%arg0: i32) -> (i32, i32) {
    %c0_i32 = arith.constant 0 : i32
    %c0_i32_0 = arith.constant 0 : i32
    %c0_i32_1 = arith.constant 0 : i32
    return %c0_i32, %c0_i32_0 : i32, i32
  }
  func.func @transform_4(%arg0: i32) -> (i32, i32) {
    %c0_i32 = arith.constant 0 : i32
    %c0_i32_0 = arith.constant 0 : i32
    %c0_i32_1 = arith.constant 0 : i32
    return %c0_i32, %c0_i32_0 : i32, i32
  }
  func.func @transform_5(%arg0: i32) -> (i32, i32) {
    %c0_i32 = arith.constant 0 : i32
    %c0_i32_0 = arith.constant 0 : i32
    %c0_i32_1 = arith.constant 0 : i32
    return %c0_i32, %c0_i32_0 : i32, i32
  }
  func.func @transform_6(%arg0: i32) -> (i32, i32) {
    %c0_i32 = arith.constant 0 : i32
    %c0_i32_0 = arith.constant 0 : i32
    %c0_i32_1 = arith.constant 0 : i32
    return %c0_i32, %c0_i32_0 : i32, i32
  }
  func.func @transform_7(%arg0: i32) -> (i32, i32) {
    %c0_i32 = arith.constant 0 : i32
    %c0_i32_0 = arith.constant 0 : i32
    %c0_i32_1 = arith.constant 0 : i32
    return %c0_i32, %c0_i32_0 : i32, i32
  }
  func.func @transform_8(%arg0: i32) -> (i32, i32) {
    %c0_i32 = arith.constant 0 : i32
    %c0_i32_0 = arith.constant 0 : i32
    %c0_i32_1 = arith.constant 0 : i32
    return %c0_i32, %c0_i32_0 : i32, i32
  }
  func.func @transform_9(%arg0: i32) -> (i32, i32) {
    %c0_i32 = arith.constant 0 : i32
    %c0_i32_0 = arith.constant 0 : i32
    %c0_i32_1 = arith.constant 0 : i32
    return %c0_i32, %c0_i32_0 : i32, i32
  }
  func.func @transform_10(%arg0: i32) -> (i32, i32, i32) {
    %c0_i32 = arith.constant 0 : i32
    %c0_i32_0 = arith.constant 0 : i32
    %c0_i32_1 = arith.constant 0 : i32
    return %arg0, %c0_i32, %c0_i32_0 : i32, i32, i32
  }
}

</mosaic_0001>

<llo_original>
// kernel: tpu_custom_call.1
$region0: #{tpu_custom_call.1}
  #allocation0 [shape = 'u32[]', space=smem, size = 0x4, offset = 0x4, fixed_abs, tag = 'smem constant byte address 0x4 - core index']
  #allocation1 [shape = 'u32[144,128]{1,0:T(1,128)}', space=vmem, size = 0x12000, scoped, tag = 'internal scratch']
  %s0 = inlined_call_operand.vmem [shape: f32[2,4,256], index: 0, kind: input, shape index: {}]
  %s1 = inlined_call_operand.vmem [shape: f32[2,1,32], index: 1, kind: input, shape index: {}]
  %s2 = inlined_call_operand.vmem [shape: f32[32,4], index: 2, kind: input, shape index: {}]
  %s3 = inlined_call_operand.vmem [shape: f32[1,4], index: 3, kind: input, shape index: {}]
  %s4 = inlined_call_operand.vmem [shape: f32[4,4], index: 4, kind: input, shape index: {}]
  %s5 = inlined_call_operand.vmem [shape: f32[4,1], index: 5, kind: input, shape index: {}]
  %s6 = inlined_call_operand.vmem [shape: f32[4,4], index: 6, kind: input, shape index: {}]
  %s7 = inlined_call_operand.vmem [shape: f32[4,1], index: 7, kind: input, shape index: {}]
  %s8 = inlined_call_operand.vmem [shape: f32[4,4], index: 8, kind: input, shape index: {}]
  %s9 = inlined_call_operand.vmem [shape: f32[4,1], index: 9, kind: input, shape index: {}]
  %s10 = inlined_call_operand.hbm [shape: f32[2,4,256], index: 10, kind: output, shape index: {}]
  %s11 = sld [smem:[#allocation0]]
  $region73: #{tpu_custom_call.1} parent=0
    _
  %s13 = ssub.s32 1, %s11
  %s14 = scalar_select 0, %s13, %s11
  $region1: #{tpu_custom_call.1} parent=0
    #allocation2 [shape = 'u8[8192]{0}', space=vmem, size = 0x2000, scoped, tag = 'output window, operand 0']
    #allocation3 [shape = 's32[2]{0}', space=sflag, size = 0x8, scoped, tag = 'scoped memory for tpu_custom_call.1']
    %15 = vsyncpa [#allocation3], 0
    %s16 = scalar_lea.sflag [#allocation3], 1
    %17 = vsyncpa %s16, 0
    loop: start=0, step=1, limit=4
    $region2: #{tpu_custom_call.1} parent=1 // loop_pre_header
      _
    $region3: #{tpu_custom_call.1} parent=1 // loop_header
      %s19 = sphi 0, %s23
      %p20 = scmp.ge.s32.totalorder %s19, 4
      %s29 = sphi 0, %s31
      %s32 = sphi 0, %s29
      %s33 = sphi 0, %s32
      %s49 = sphi 0, %s33
      %s55 = sphi 0, %s57
      %s58 = sphi 0, %s55
      %s59 = sphi 0, %s58
      %s75 = sphi 0, %s59
      %s79 = sphi 0, %s79
      %s81 = sphi 0, %s79
      %s82 = sphi 0, %s81
      %s96 = sphi 0, %s82
      %s100 = sphi 0, %s100
      %s102 = sphi 0, %s100
      %s103 = sphi 0, %s102
      %s117 = sphi 0, %s103
      %s121 = sphi 0, %s121
      %s123 = sphi 0, %s121
      %s124 = sphi 0, %s123
      %s138 = sphi 0, %s124
      %s142 = sphi 0, %s142
      %s144 = sphi 0, %s142
      %s145 = sphi 0, %s144
      %s159 = sphi 0, %s145
      %s163 = sphi 0, %s163
      %s165 = sphi 0, %s163
      %s166 = sphi 0, %s165
      %s180 = sphi 0, %s166
      %s184 = sphi 0, %s184
      %s186 = sphi 0, %s184
      %s187 = sphi 0, %s186
      %s201 = sphi 0, %s187
      %s205 = sphi 0, %s205
      %s207 = sphi 0, %s205
      %s208 = sphi 0, %s207
      %s222 = sphi 0, %s208
      %s226 = sphi 0, %s226
      %s228 = sphi 0, %s226
      %s229 = sphi 0, %s228
      %s243 = sphi 0, %s229
      %s249 = sphi 0, %s251
      %s252 = sphi 0, %s249
      %s253 = sphi 0, %s252
      %s269 = sphi 0, %s253
    $region4: #{tpu_custom_call.1} parent=1 // loop_header_branch
      %22 = sbr.rel (%p20) target = $region8
    $region5: #{tpu_custom_call.1} parent=1 // loop_body
      %s24 = ssub.s32 %s19, 1
      %s25 = ssub.s32 %s19, 2
      %s26 = sadd.s32 %s19, 1
      %s27 = ssub.s32 %s19, %s26
      %p28 = scmp.eq.s32.totalorder %s27, 0
      %s30 = sadd.s32 %s29, 1
      %s31 = scalar_select %p28, %s29, %s30
      %p34 = pneg %p28
      %p35 = scmp.eq.s32.totalorder %s19, 1
      %p36 = por %p34, %p35
      %p37 = scmp.ne.s32.totalorder %s29, %s32
      %p38 = scmp.eq.s32.totalorder %s19, 0
      %p39 = por %p37, %p38
      %p40 = scmp.ne.s32.totalorder %s29, %s32
      %p41 = scmp.eq.s32.totalorder %s24, 1
      %p42 = por %p40, %p41
      %p43 = scmp.ne.s32.totalorder %s32, %s33
      %p44 = scmp.eq.s32.totalorder %s24, 0
      %p45 = por %p43, %p44
      %p46 = scmp.ne.s32.totalorder %s32, %s33
      %p47 = scmp.eq.s32.totalorder %s25, 1
      %p48 = por %p46, %p47
      %p50 = scmp.ne.s32.totalorder %s33, %s49
      %p51 = scmp.eq.s32.totalorder %s25, 0
      %p52 = por %p50, %p51
      %s53 = ssub.s32 %s19, %s26
      %p54 = scmp.eq.s32.totalorder %s53, 0
      %s56 = sadd.s32 %s55, 1
      %s57 = scalar_select %p54, %s55, %s56
      %p60 = pneg %p54
      %p61 = scmp.eq.s32.totalorder %s19, 1
      %p62 = por %p60, %p61
      %p63 = scmp.ne.s32.totalorder %s55, %s58
      %p64 = scmp.eq.s32.totalorder %s19, 0
      %p65 = por %p63, %p64
      %p66 = scmp.ne.s32.totalorder %s55, %s58
      %p67 = scmp.eq.s32.totalorder %s24, 1
      %p68 = por %p66, %p67
      %p69 = scmp.ne.s32.totalorder %s58, %s59
      %p70 = scmp.eq.s32.totalorder %s24, 0
      %p71 = por %p69, %p70
      %p72 = scmp.ne.s32.totalorder %s58, %s59
      %p73 = scmp.eq.s32.totalorder %s25, 1
      %p74 = por %p72, %p73
      %p76 = scmp.ne.s32.totalorder %s59, %s75
      %p77 = scmp.eq.s32.totalorder %s25, 0
      %p78 = por %p76, %p77
      %s80 = sadd.s32 %s79, 1
      %p83 = scmp.eq.s32.totalorder %s19, 1
      %p84 = scmp.ne.s32.totalorder %s79, %s81
      %p85 = scmp.eq.s32.totalorder %s19, 0
      %p86 = por %p84, %p85
      %p87 = scmp.ne.s32.totalorder %s79, %s81
      %p88 = scmp.eq.s32.totalorder %s24, 1
      %p89 = por %p87, %p88
      %p90 = scmp.ne.s32.totalorder %s81, %s82
      %p91 = scmp.eq.s32.totalorder %s24, 0
      %p92 = por %p90, %p91
      %p93 = scmp.ne.s32.totalorder %s81, %s82
      %p94 = scmp.eq.s32.totalorder %s25, 1
      %p95 = por %p93, %p94
      %p97 = scmp.ne.s32.totalorder %s82, %s96
      %p98 = scmp.eq.s32.totalorder %s25, 0
      %p99 = por %p97, %p98
      %s101 = sadd.s32 %s100, 1
      %p104 = scmp.eq.s32.totalorder %s19, 1
      %p105 = scmp.ne.s32.totalorder %s100, %s102
      %p106 = scmp.eq.s32.totalorder %s19, 0
      %p107 = por %p105, %p106
      %p108 = scmp.ne.s32.totalorder %s100, %s102
      %p109 = scmp.eq.s32.totalorder %s24, 1
      %p110 = por %p108, %p109
      %p111 = scmp.ne.s32.totalorder %s102, %s103
      %p112 = scmp.eq.s32.totalorder %s24, 0
      %p113 = por %p111, %p112
      %p114 = scmp.ne.s32.totalorder %s102, %s103
      %p115 = scmp.eq.s32.totalorder %s25, 1
      %p116 = por %p114, %p115
      %p118 = scmp.ne.s32.totalorder %s103, %s117
      %p119 = scmp.eq.s32.totalorder %s25, 0
      %p120 = por %p118, %p119
      %s122 = sadd.s32 %s121, 1
      %p125 = scmp.eq.s32.totalorder %s19, 1
      %p126 = scmp.ne.s32.totalorder %s121, %s123
      %p127 = scmp.eq.s32.totalorder %s19, 0
      %p128 = por %p126, %p127
      %p129 = scmp.ne.s32.totalorder %s121, %s123
      %p130 = scmp.eq.s32.totalorder %s24, 1
      %p131 = por %p129, %p130
      %p132 = scmp.ne.s32.totalorder %s123, %s124
      %p133 = scmp.eq.s32.totalorder %s24, 0
      %p134 = por %p132, %p133
      %p135 = scmp.ne.s32.totalorder %s123, %s124
      %p136 = scmp.eq.s32.totalorder %s25, 1
      %p137 = por %p135, %p136
      %p139 = scmp.ne.s32.totalorder %s124, %s138
      %p140 = scmp.eq.s32.totalorder %s25, 0
      %p141 = por %p139, %p140
      %s143 = sadd.s32 %s142, 1
      %p146 = scmp.eq.s32.totalorder %s19, 1
      %p147 = scmp.ne.s32.totalorder %s142, %s144
      %p148 = scmp.eq.s32.totalorder %s19, 0
      %p149 = por %p147, %p148
      %p150 = scmp.ne.s32.totalorder %s142, %s144
      %p151 = scmp.eq.s32.totalorder %s24, 1
      %p152 = por %p150, %p151
      %p153 = scmp.ne.s32.totalorder %s144, %s145
      %p154 = scmp.eq.s32.totalorder %s24, 0
      %p155 = por %p153, %p154
      %p156 = scmp.ne.s32.totalorder %s144, %s145
      %p157 = scmp.eq.s32.totalorder %s25, 1
      %p158 = por %p156, %p157
      %p160 = scmp.ne.s32.totalorder %s145, %s159
      %p161 = scmp.eq.s32.totalorder %s25, 0
      %p162 = por %p160, %p161
      %s164 = sadd.s32 %s163, 1
      %p167 = scmp.eq.s32.totalorder %s19, 1
      %p168 = scmp.ne.s32.totalorder %s163, %s165
      %p169 = scmp.eq.s32.totalorder %s19, 0
      %p170 = por %p168, %p169
      %p171 = scmp.ne.s32.totalorder %s163, %s165
      %p172 = scmp.eq.s32.totalorder %s24, 1
      %p173 = por %p171, %p172
      %p174 = scmp.ne.s32.totalorder %s165, %s166
      %p175 = scmp.eq.s32.totalorder %s24, 0
      %p176 = por %p174, %p175
      %p177 = scmp.ne.s32.totalorder %s165, %s166
      %p178 = scmp.eq.s32.totalorder %s25, 1
      %p179 = por %p177, %p178
      %p181 = scmp.ne.s32.totalorder %s166, %s180
      %p182 = scmp.eq.s32.totalorder %s25, 0
      %p183 = por %p181, %p182
      %s185 = sadd.s32 %s184, 1
      %p188 = scmp.eq.s32.totalorder %s19, 1
      %p189 = scmp.ne.s32.totalorder %s184, %s186
      %p190 = scmp.eq.s32.totalorder %s19, 0
      %p191 = por %p189, %p190
      %p192 = scmp.ne.s32.totalorder %s184, %s186
      %p193 = scmp.eq.s32.totalorder %s24, 1
      %p194 = por %p192, %p193
      %p195 = scmp.ne.s32.totalorder %s186, %s187
      %p196 = scmp.eq.s32.totalorder %s24, 0
      %p197 = por %p195, %p196
      %p198 = scmp.ne.s32.totalorder %s186, %s187
      %p199 = scmp.eq.s32.totalorder %s25, 1
      %p200 = por %p198, %p199
      %p202 = scmp.ne.s32.totalorder %s187, %s201
      %p203 = scmp.eq.s32.totalorder %s25, 0
      %p204 = por %p202, %p203
      %s206 = sadd.s32 %s205, 1
      %p209 = scmp.eq.s32.totalorder %s19, 1
      %p210 = scmp.ne.s32.totalorder %s205, %s207
      %p211 = scmp.eq.s32.totalorder %s19, 0
      %p212 = por %p210, %p211
      %p213 = scmp.ne.s32.totalorder %s205, %s207
      %p214 = scmp.eq.s32.totalorder %s24, 1
      %p215 = por %p213, %p214
      %p216 = scmp.ne.s32.totalorder %s207, %s208
      %p217 = scmp.eq.s32.totalorder %s24, 0
      %p218 = por %p216, %p217
      %p219 = scmp.ne.s32.totalorder %s207, %s208
      %p220 = scmp.eq.s32.totalorder %s25, 1
      %p221 = por %p219, %p220
      %p223 = scmp.ne.s32.totalorder %s208, %s222
      %p224 = scmp.eq.s32.totalorder %s25, 0
      %p225 = por %p223, %p224
      %s227 = sadd.s32 %s226, 1
      %p230 = scmp.eq.s32.totalorder %s19, 1
      %p231 = scmp.ne.s32.totalorder %s226, %s228
      %p232 = scmp.eq.s32.totalorder %s19, 0
      %p233 = por %p231, %p232
      %p234 = scmp.ne.s32.totalorder %s226, %s228
      %p235 = scmp.eq.s32.totalorder %s24, 1
      %p236 = por %p234, %p235
      %p237 = scmp.ne.s32.totalorder %s228, %s229
      %p238 = scmp.eq.s32.totalorder %s24, 0
      %p239 = por %p237, %p238
      %p240 = scmp.ne.s32.totalorder %s228, %s229
      %p241 = scmp.eq.s32.totalorder %s25, 1
      %p242 = por %p240, %p241
      %p244 = scmp.ne.s32.totalorder %s229, %s243
      %p245 = scmp.eq.s32.totalorder %s25, 0
      %p246 = por %p244, %p245
      %s247 = ssub.s32 %s19, %s26
      %p248 = scmp.eq.s32.totalorder %s247, 0
      %s250 = sadd.s32 %s249, 1
      %s251 = scalar_select %p248, %s249, %s250
      %p254 = pneg %p248
      %p255 = scmp.eq.s32.totalorder %s19, 1
      %p256 = por %p254, %p255
      %p257 = scmp.ne.s32.totalorder %s249, %s252
      %p258 = scmp.eq.s32.totalorder %s19, 0
      %p259 = por %p257, %p258
      %p260 = scmp.ne.s32.totalorder %s249, %s252
      %p261 = scmp.eq.s32.totalorder %s24, 1
      %p262 = por %p260, %p261
      %p263 = scmp.ne.s32.totalorder %s252, %s253
      %p264 = scmp.eq.s32.totalorder %s24, 0
      %p265 = por %p263, %p264
      %p266 = scmp.ne.s32.totalorder %s252, %s253
      %p267 = scmp.eq.s32.totalorder %s25, 1
      %p268 = por %p266, %p267
      %p270 = scmp.ne.s32.totalorder %s253, %s269
      %p271 = scmp.eq.s32.totalorder %s25, 0
      %p272 = por %p270, %p271
      %p273 = scmp.le.s32.totalorder 1, %s19
      %p274 = scmp.lt.s32.totalorder %s19, 3
      %p275 = pnand %p273, %p274
      %p276 = pneg %p275
      // Predicated region
      $region9: #{tpu_custom_call.1} parent=5 // pred_check
        _
      $region10: #{tpu_custom_call.1} parent=5 // pred_check_branch
        %278 = sbr.rel (%p275) target = $region12
      $region11: #{tpu_custom_call.1} parent=5 // pred_region
        %s279 = ssub.s32 %s19, 1
        // Predicated region
        $region13: #{tpu_custom_call.1} parent=11 // pred_check
          %p280 = pneg %p92
        $region14: #{tpu_custom_call.1} parent=11 // pred_check_branch
          %282 = sbr.rel (%p280) target = $region16
        $region15: #{tpu_custom_call.1} parent=11 // pred_region
          _
        $region16: #{tpu_custom_call.1} parent=11 // pred_fallthru
          _
        // Predicated region
        $region17: #{tpu_custom_call.1} parent=11 // pred_check
          %p283 = pneg %p113
        $region18: #{tpu_custom_call.1} parent=11 // pred_check_branch
          %285 = sbr.rel (%p283) target = $region20
        $region19: #{tpu_custom_call.1} parent=11 // pred_region
          _
        $region20: #{tpu_custom_call.1} parent=11 // pred_fallthru
          _
        // Predicated region
        $region21: #{tpu_custom_call.1} parent=11 // pred_check
          %p286 = pneg %p134
        $region22: #{tpu_custom_call.1} parent=11 // pred_check_branch
          %288 = sbr.rel (%p286) target = $region24
        $region23: #{tpu_custom_call.1} parent=11 // pred_region
          _
        $region24: #{tpu_custom_call.1} parent=11 // pred_fallthru
          _
        // Predicated region
        $region25: #{tpu_custom_call.1} parent=11 // pred_check
          %p289 = pneg %p155
        $region26: #{tpu_custom_call.1} parent=11 // pred_check_branch
          %291 = sbr.rel (%p289) target = $region28
        $region27: #{tpu_custom_call.1} parent=11 // pred_region
          _
        $region28: #{tpu_custom_call.1} parent=11 // pred_fallthru
          _
        // Predicated region
        $region29: #{tpu_custom_call.1} parent=11 // pred_check
          %p292 = pneg %p176
        $region30: #{tpu_custom_call.1} parent=11 // pred_check_branch
          %294 = sbr.rel (%p292) target = $region32
        $region31: #{tpu_custom_call.1} parent=11 // pred_region
          _
        $region32: #{tpu_custom_call.1} parent=11 // pred_fallthru
          _
        // Predicated region
        $region33: #{tpu_custom_call.1} parent=11 // pred_check
          %p295 = pneg %p197
        $region34: #{tpu_custom_call.1} parent=11 // pred_check_branch
          %297 = sbr.rel (%p295) target = $region36
        $region35: #{tpu_custom_call.1} parent=11 // pred_region
          _
        $region36: #{tpu_custom_call.1} parent=11 // pred_fallthru
          _
        // Predicated region
        $region37: #{tpu_custom_call.1} parent=11 // pred_check
          %p298 = pneg %p218
        $region38: #{tpu_custom_call.1} parent=11 // pred_check_branch
          %300 = sbr.rel (%p298) target = $region40
        $region39: #{tpu_custom_call.1} parent=11 // pred_region
          _
        $region40: #{tpu_custom_call.1} parent=11 // pred_fallthru
          _
        // Predicated region
        $region41: #{tpu_custom_call.1} parent=11 // pred_check
          %p301 = pneg %p239
        $region42: #{tpu_custom_call.1} parent=11 // pred_check_branch
          %303 = sbr.rel (%p301) target = $region44
        $region43: #{tpu_custom_call.1} parent=11 // pred_region
          _
        $region44: #{tpu_custom_call.1} parent=11 // pred_fallthru
          _
      $region12: #{tpu_custom_call.1} parent=5 // pred_fallthru
        _
      %p304 = scmp.lt.s32.totalorder %s19, 2
      // Predicated region
      $region45: #{tpu_custom_call.1} parent=5 // pred_check
        %p305 = pneg %p304
      $region46: #{tpu_custom_call.1} parent=5 // pred_check_branch
        %307 = sbr.rel (%p305) target = $region48
      $region47: #{tpu_custom_call.1} parent=5 // pred_region
        // Predicated region
        $region49: #{tpu_custom_call.1} parent=47 // pred_check
          %p308 = pneg %p39
        $region50: #{tpu_custom_call.1} parent=47 // pred_check_branch
          %310 = sbr.rel (%p308) target = $region52
        $region51: #{tpu_custom_call.1} parent=47 // pred_region
          %p311 = scmp.lt.s32.totalorder %s19, 1
          %s312 = scalar_select %p311, %s19, 1
          %s313 = smul.addr %s312, 2
          %s314 = smul.addr %s313, 4
          %s315 = scalar_lea.vmem %s0, %s314
        $region52: #{tpu_custom_call.1} parent=47 // pred_fallthru
          _
        // Predicated region
        $region53: #{tpu_custom_call.1} parent=47 // pred_check
          %p316 = pneg %p65
        $region54: #{tpu_custom_call.1} parent=47 // pred_check_branch
          %318 = sbr.rel (%p316) target = $region56
        $region55: #{tpu_custom_call.1} parent=47 // pred_region
          %p319 = scmp.lt.s32.totalorder %s19, 1
          %s320 = scalar_select %p319, %s19, 1
          %s321 = scalar_lea.vmem %s1, %s320
        $region56: #{tpu_custom_call.1} parent=47 // pred_fallthru
          _
      $region48: #{tpu_custom_call.1} parent=5 // pred_fallthru
        _
      %p322 = scmp.le.s32.totalorder 1, %s19
      %p323 = scmp.lt.s32.totalorder %s19, 3
      %p324 = pnand %p322, %p323
      %p325 = pneg %p324
      // Predicated region
      $region57: #{tpu_custom_call.1} parent=5 // pred_check
        _
      $region58: #{tpu_custom_call.1} parent=5 // pred_check_branch
        %327 = sbr.rel (%p324) target = $region60
      $region59: #{tpu_custom_call.1} parent=5 // pred_region
        %s328 = ssub.s32 %s19, 1
        %p329 = scmp.lt.s32.totalorder %s24, 1
        %s330 = scalar_select %p329, %s24, 1
        %s331 = smul.addr %s330, 2
        %s332 = smul.addr %s331, 4
        %s333 = scalar_lea.vmem %s0, %s332
        %p334 = pneg %p45
        %p335 = pneg %p42
        %p336 = scmp.lt.s32.totalorder %s24, 1
        %s337 = scalar_select %p336, %s24, 1
        %s338 = scalar_lea.vmem %s1, %s337
        %p339 = pneg %p71
        %p340 = pneg %p68
        %p341 = pneg %p92
        %p342 = pneg %p89
        %p343 = pneg %p113
        %p344 = pneg %p110
        %p345 = pneg %p134
        %p346 = pneg %p131
        %p347 = pneg %p155
        %p348 = pneg %p152
        %p349 = pneg %p176
        %p350 = pneg %p173
        %p351 = pneg %p197
        %p352 = pneg %p194
        %p353 = pneg %p218
        %p354 = pneg %p215
        %p355 = pneg %p239
        %p356 = pneg %p236
        %p357 = pneg %p265
        %p358 = pneg %p262
        %s359 = sand.u32 %s252, 1
        %s360 = scalar_lea.sflag [#allocation3], %s359
        %s361 = sand.u32 %s252, 1
        %s362 = smul.addr %s361, 8
        %s363 = scalar_lea.vmem [#allocation2], %s362
        %p364 = scmp.lt.s32.totalorder %s24, 1
        %s365 = scalar_select %p364, %s24, 1
        %s366 = smul.addr %s365, 2
        %s367 = smul.addr %s366, 4
        %s368 = scalar_lea.vmem %s0, %s367
        %p369 = scmp.lt.s32.totalorder %s24, 1
        %s370 = scalar_select %p369, %s24, 1
        %s371 = scalar_lea.vmem %s1, %s370
        %v372 = vld [vmem:[%s368] sm:$0xff]
        %v373 = vld [vmem:[%s371] sm:$0x1]
        %v374 = vld [vmem:[%s2] sm:$0xff]
        %v375 = vld [vmem:[%s2 + $0x8] sm:$0xff]
        %v376 = vld [vmem:[%s2 + $0x10] sm:$0xff]
        %v377 = vld [vmem:[%s2 + $0x18] sm:$0xff]
        %v378 = vld [vmem:[%s3] sm:$0x1]
        %vm379 = vcmask 261120
        %v381 = vsel %vm379, %v373, 0
        %383 = vmatprep.subr.mxu0 0.0
        %384 = vmatpush1.msra.mxu0 0.0
        %385 = vmatprep.subr.mxu0 0.0
        %386 = vmatpush1.msra.mxu0 0.0
        %387 = vmatprep.subr.mxu0 0.0
        %388 = vmatpush1.msra.mxu0 0.0
        %389 = vmatprep.subr.mxu0 0.0
        %390 = vmatpush1.msra.mxu0 0.0
        %391 = vmatprep.subr.mxu0 0.0
        %392 = vmatpush1.msra.mxu0 0.0
        %393 = vmatprep.subr.mxu0 0.0
        %394 = vmatpush1.msra.mxu0 0.0
        %395 = vmatprep.subr.mxu0 0.0
        %396 = vmatpush1.msra.mxu0 0.0
        %397 = vmatprep.subr.mxu0 0.0
        %398 = vmatpush1.msra.mxu0 0.0
        %399 = vmatprep.subr.mxu0 0.0
        %400 = vmatpush1.msra.mxu0 0.0
        %401 = vmatprep.subr.mxu0 0.0
        %402 = vmatpush1.msra.mxu0 0.0
        %403 = vmatprep.subr.mxu0 0.0
        %404 = vmatpush1.msra.mxu0 0.0
        %405 = vmatprep.subr.mxu0 0.0
        %406 = vmatpush1.msra.mxu0 0.0
        %407 = vmatprep.subr.mxu0 0.0
        %408 = vmatpush1.msra.mxu0 %v377
        %409 = vmatprep.subr.mxu0 0.0
        %410 = vmatpush1.msra.mxu0 %v376
        %411 = vmatprep.subr.mxu0 0.0
        %412 = vmatpush1.msra.mxu0 %v375
        %413 = vmatprep.subr.mxu0 0.0
        %414 = vmatpush1.msra.mxu0 %v374
        %415 = vmatprep.subr.mxu0 0.0
        %416 = vmatpush2.msra.mxu0 0.0
        %417 = vmatprep.subr.mxu0 0.0
        %418 = vmatpush2.msra.mxu0 0.0
        %419 = vmatprep.subr.mxu0 0.0
        %420 = vmatpush2.msra.mxu0 0.0
        %421 = vmatprep.subr.mxu0 0.0
        %422 = vmatpush2.msra.mxu0 0.0
        %423 = vmatprep.subr.mxu0 0.0
        %424 = vmatpush2.msra.mxu0 0.0
        %425 = vmatprep.subr.mxu0 0.0
        %426 = vmatpush2.msra.mxu0 0.0
        %427 = vmatprep.subr.mxu0 0.0
        %428 = vmatpush2.msra.mxu0 0.0
        %429 = vmatprep.subr.mxu0 0.0
        %430 = vmatpush2.msra.mxu0 0.0
        %431 = vmatprep.subr.mxu0 0.0
        %432 = vmatpush2.msra.mxu0 0.0
        %433 = vmatprep.subr.mxu0 0.0
        %434 = vmatpush2.msra.mxu0 0.0
        %435 = vmatprep.subr.mxu0 0.0
        %436 = vmatpush2.msra.mxu0 0.0
        %437 = vmatprep.subr.mxu0 0.0
        %438 = vmatpush2.msra.mxu0 0.0
        %439 = vmatprep.subr.mxu0 0.0
        %440 = vmatpush2.msra.mxu0 0.0
        %441 = vmatprep.subr.mxu0 0.0
        %442 = vmatpush2.msra.mxu0 0.0
        %443 = vmatprep.subr.mxu0 0.0
        %444 = vmatpush2.msra.mxu0 0.0
        %445 = vmatprep.subr.mxu0 0.0
        %446 = vmatpush2.msra.mxu0 0.0
        %447 = vmatprep.mubr.f32.mxu0 0.0
        %448 = vmatmul.mubr.f32.gmra.mxu0 %v381
        %v449 = vpop.f32.mrf.mxu0
        %v450 = vadd.f32 %v378, %v449
        %v451 = vpop.f32.mrf.mxu0
        %452 = vdwg.mxu0
        %v453 = vld [vmem:[%s4] sm:$0xf]
        %vm454 = vcmask 31744
        %v456 = vsel %vm454, %v450, 0
        %vm458 = vcmask 1043456
        %v460 = vsel %vm458, %v453, 0
        %462 = vmatprep.subr.mxu0 0.0
        %463 = vmatpush1.msra.mxu0 0.0
        %464 = vmatprep.subr.mxu0 0.0
        %465 = vmatpush1.msra.mxu0 0.0
        %466 = vmatprep.subr.mxu0 0.0
        %467 = vmatpush1.msra.mxu0 0.0
        %468 = vmatprep.subr.mxu0 0.0
        %469 = vmatpush1.msra.mxu0 0.0
        %470 = vmatprep.subr.mxu0 0.0
        %471 = vmatpush1.msra.mxu0 0.0
        %472 = vmatprep.subr.mxu0 0.0
        %473 = vmatpush1.msra.mxu0 0.0
        %474 = vmatprep.subr.mxu0 0.0
        %475 = vmatpush1.msra.mxu0 0.0
        %476 = vmatprep.subr.mxu0 0.0
        %477 = vmatpush1.msra.mxu0 0.0
        %478 = vmatprep.subr.mxu0 0.0
        %479 = vmatpush1.msra.mxu0 0.0
        %480 = vmatprep.subr.mxu0 0.0
        %481 = vmatpush1.msra.mxu0 0.0
        %482 = vmatprep.subr.mxu0 0.0
        %483 = vmatpush1.msra.mxu0 0.0
        %484 = vmatprep.subr.mxu0 0.0
        %485 = vmatpush1.msra.mxu0 0.0
        %486 = vmatprep.subr.mxu0 0.0
        %487 = vmatpush1.msra.mxu0 0.0
        %488 = vmatprep.subr.mxu0 0.0
        %489 = vmatpush1.msra.mxu0 0.0
        %490 = vmatprep.subr.mxu0 0.0
        %491 = vmatpush1.msra.mxu0 0.0
        %492 = vmatprep.subr.mxu0 0.0
        %493 = vmatpush1.msra.mxu0 %v460
        %494 = vmatprep.subr.mxu0 0.0
        %495 = vmatpush2.msra.mxu0 0.0
        %496 = vmatprep.subr.mxu0 0.0
        %497 = vmatpush2.msra.mxu0 0.0
        %498 = vmatprep.subr.mxu0 0.0
        %499 = vmatpush2.msra.mxu0 0.0
        %500 = vmatprep.subr.mxu0 0.0
        %501 = vmatpush2.msra.mxu0 0.0
        %502 = vmatprep.subr.mxu0 0.0
        %503 = vmatpush2.msra.mxu0 0.0
        %504 = vmatprep.subr.mxu0 0.0
        %505 = vmatpush2.msra.mxu0 0.0
        %506 = vmatprep.subr.mxu0 0.0
        %507 = vmatpush2.msra.mxu0 0.0
        %508 = vmatprep.subr.mxu0 0.0
        %509 = vmatpush2.msra.mxu0 0.0
        %510 = vmatprep.subr.mxu0 0.0
        %511 = vmatpush2.msra.mxu0 0.0
        %512 = vmatprep.subr.mxu0 0.0
        %513 = vmatpush2.msra.mxu0 0.0
        %514 = vmatprep.subr.mxu0 0.0
        %515 = vmatpush2.msra.mxu0 0.0
        %516 = vmatprep.subr.mxu0 0.0
        %517 = vmatpush2.msra.mxu0 0.0
        %518 = vmatprep.subr.mxu0 0.0
        %519 = vmatpush2.msra.mxu0 0.0
        %520 = vmatprep.subr.mxu0 0.0
        %521 = vmatpush2.msra.mxu0 0.0
        %522 = vmatprep.subr.mxu0 0.0
        %523 = vmatpush2.msra.mxu0 0.0
        %524 = vmatprep.subr.mxu0 0.0
        %525 = vmatpush2.msra.mxu0 0.0
        %526 = vmatprep.mubr.f32.mxu0 0.0
        %527 = vmatmul.mubr.f32.gmra.mxu0 %v456
        %v528 = vpop.f32.mrf.mxu0
        %v529 = vadd.f32 0.0, %v528
        %v530 = vpop.f32.mrf.mxu0
        %531 = vdwg.mxu0
        %v532 = vld [vmem:[%s5] sm:$0xf]
        %v534 = vsel %vm458, %v532, 0
        %536 = vmatprep.subr.mxu0 0.0
        %537 = vmatpush1.msra.mxu0 0.0
        %538 = vmatprep.subr.mxu0 0.0
        %539 = vmatpush1.msra.mxu0 0.0
        %540 = vmatprep.subr.mxu0 0.0
        %541 = vmatpush1.msra.mxu0 0.0
        %542 = vmatprep.subr.mxu0 0.0
        %543 = vmatpush1.msra.mxu0 0.0
        %544 = vmatprep.subr.mxu0 0.0
        %545 = vmatpush1.msra.mxu0 0.0
        %546 = vmatprep.subr.mxu0 0.0
        %547 = vmatpush1.msra.mxu0 0.0
        %548 = vmatprep.subr.mxu0 0.0
        %549 = vmatpush1.msra.mxu0 0.0
        %550 = vmatprep.subr.mxu0 0.0
        %551 = vmatpush1.msra.mxu0 0.0
        %552 = vmatprep.subr.mxu0 0.0
        %553 = vmatpush1.msra.mxu0 0.0
        %554 = vmatprep.subr.mxu0 0.0
        %555 = vmatpush1.msra.mxu0 0.0
        %556 = vmatprep.subr.mxu0 0.0
        %557 = vmatpush1.msra.mxu0 0.0
        %558 = vmatprep.subr.mxu0 0.0
        %559 = vmatpush1.msra.mxu0 0.0
        %560 = vmatprep.subr.mxu0 0.0
        %561 = vmatpush1.msra.mxu0 0.0
        %562 = vmatprep.subr.mxu0 0.0
        %563 = vmatpush1.msra.mxu0 0.0
        %564 = vmatprep.subr.mxu0 0.0
        %565 = vmatpush1.msra.mxu0 0.0
        %566 = vmatprep.subr.mxu0 0.0
        %567 = vmatpush1.msra.mxu0 %v534
        %568 = vmatprep.subr.mxu0 0.0
        %569 = vmatpush2.msra.mxu0 0.0
        %570 = vmatprep.subr.mxu0 0.0
        %571 = vmatpush2.msra.mxu0 0.0
        %572 = vmatprep.subr.mxu0 0.0
        %573 = vmatpush2.msra.mxu0 0.0
        %574 = vmatprep.subr.mxu0 0.0
        %575 = vmatpush2.msra.mxu0 0.0
        %576 = vmatprep.subr.mxu0 0.0
        %577 = vmatpush2.msra.mxu0 0.0
        %578 = vmatprep.subr.mxu0 0.0
        %579 = vmatpush2.msra.mxu0 0.0
        %580 = vmatprep.subr.mxu0 0.0
        %581 = vmatpush2.msra.mxu0 0.0
        %582 = vmatprep.subr.mxu0 0.0
        %583 = vmatpush2.msra.mxu0 0.0
        %584 = vmatprep.subr.mxu0 0.0
        %585 = vmatpush2.msra.mxu0 0.0
        %586 = vmatprep.subr.mxu0 0.0
        %587 = vmatpush2.msra.mxu0 0.0
        %588 = vmatprep.subr.mxu0 0.0
        %589 = vmatpush2.msra.mxu0 0.0
        %590 = vmatprep.subr.mxu0 0.0
        %591 = vmatpush2.msra.mxu0 0.0
        %592 = vmatprep.subr.mxu0 0.0
        %593 = vmatpush2.msra.mxu0 0.0
        %594 = vmatprep.subr.mxu0 0.0
        %595 = vmatpush2.msra.mxu0 0.0
        %596 = vmatprep.subr.mxu0 0.0
        %597 = vmatpush2.msra.mxu0 0.0
        %598 = vmatprep.subr.mxu0 0.0
        %599 = vmatpush2.msra.mxu0 0.0
        %600 = vmatprep.mubr.f32.mxu0 0.0
        %601 = vmatmul.mubr.f32.gmra.mxu0 %v456
        %v602 = vpop.f32.mrf.mxu0
        %v603 = vadd.f32 0.0, %v602
        %v604 = vpop.f32.mrf.mxu0
        %605 = vdwg.mxu0
        %607 = vset.pattern.permute.xlu0 0
        %608 = vperm.xlu0 %607, %v603
        %v609 = vpop.permute.xlu0 %608
        %v612 = vcombine.high %v372, %v372
        %v614 = vsel %vm454, %v529, 0
        %v616 = vsel %vm458, %v372, 0
        %v618 = vsel %vm458, %v612, 0
        %620 = vmatprep.subr.mxu0 0.0
        %621 = vmatpush1.msra.mxu0 0.0
        %622 = vmatprep.subr.mxu0 0.0
        %623 = vmatpush1.msra.mxu0 0.0
        %624 = vmatprep.subr.mxu0 0.0
        %625 = vmatpush1.msra.mxu0 0.0
        %626 = vmatprep.subr.mxu0 0.0
        %627 = vmatpush1.msra.mxu0 0.0
        %628 = vmatprep.subr.mxu0 0.0
        %629 = vmatpush1.msra.mxu0 0.0
        %630 = vmatprep.subr.mxu0 0.0
        %631 = vmatpush1.msra.mxu0 0.0
        %632 = vmatprep.subr.mxu0 0.0
        %633 = vmatpush1.msra.mxu0 0.0
        %634 = vmatprep.subr.mxu0 0.0
        %635 = vmatpush1.msra.mxu0 0.0
        %636 = vmatprep.subr.mxu0 0.0
        %637 = vmatpush1.msra.mxu0 0.0
        %638 = vmatprep.subr.mxu0 0.0
        %639 = vmatpush1.msra.mxu0 0.0
        %640 = vmatprep.subr.mxu0 0.0
        %641 = vmatpush1.msra.mxu0 0.0
        %642 = vmatprep.subr.mxu0 0.0
        %643 = vmatpush1.msra.mxu0 0.0
        %644 = vmatprep.subr.mxu0 0.0
        %645 = vmatpush1.msra.mxu0 0.0
        %646 = vmatprep.subr.mxu0 0.0
        %647 = vmatpush1.msra.mxu0 0.0
        %648 = vmatprep.subr.mxu0 0.0
        %649 = vmatpush1.msra.mxu0 0.0
        %650 = vmatprep.subr.mxu0 %v618
        %651 = vmatpush1.msra.mxu0 %v616
        %652 = vmatprep.subr.mxu0 0.0
        %653 = vmatpush2.msra.mxu0 0.0
        %654 = vmatprep.subr.mxu0 0.0
        %655 = vmatpush2.msra.mxu0 0.0
        %656 = vmatprep.subr.mxu0 0.0
        %657 = vmatpush2.msra.mxu0 0.0
        %658 = vmatprep.subr.mxu0 0.0
        %659 = vmatpush2.msra.mxu0 0.0
        %660 = vmatprep.subr.mxu0 0.0
        %661 = vmatpush2.msra.mxu0 0.0
        %662 = vmatprep.subr.mxu0 0.0
        %663 = vmatpush2.msra.mxu0 0.0
        %664 = vmatprep.subr.mxu0 0.0
        %665 = vmatpush2.msra.mxu0 0.0
        %666 = vmatprep.subr.mxu0 0.0
        %667 = vmatpush2.msra.mxu0 0.0
        %668 = vmatprep.subr.mxu0 0.0
        %669 = vmatpush2.msra.mxu0 0.0
        %670 = vmatprep.subr.mxu0 0.0
        %671 = vmatpush2.msra.mxu0 0.0
        %672 = vmatprep.subr.mxu0 0.0
        %673 = vmatpush2.msra.mxu0 0.0
        %674 = vmatprep.subr.mxu0 0.0
        %675 = vmatpush2.msra.mxu0 0.0
        %676 = vmatprep.subr.mxu0 0.0
        %677 = vmatpush2.msra.mxu0 0.0
        %678 = vmatprep.subr.mxu0 0.0
        %679 = vmatpush2.msra.mxu0 0.0
        %680 = vmatprep.subr.mxu0 0.0
        %681 = vmatpush2.msra.mxu0 0.0
        %682 = vmatprep.subr.mxu0 0.0
        %683 = vmatpush2.msra.mxu0 0.0
        %684 = vmatprep.mubr.f32.mxu0 0.0
        %685 = vmatmul.mubr.f32.gmra.mxu0 %v614
        %v686 = vpop.f32.mrf.mxu0
        %v687 = vadd.f32 %v609, %v686
        %v688 = vpop.f32.mrf.mxu0
        %v689 = vadd.f32 %v609, %v688
        %690 = vdwg.mxu0
        %v691 = vmul.f32 %v687, 0.5
        %v692 = vmul.f32 %v689, 0.5
        %vm693 = vcmask 1040384
        %v694 = vsel %vm693, %v691, -inf
        %v695 = vsel %vm693, %v692, -inf
        %v696 = vmax.f32 %v694, %v695
        %697 = vmax.xlane.f32.xlu0 %v696
        %v698 = vpop.xlane.xlu0 %697
        %v699 = vsub.f32 %v691, %v698
        %v700 = vsub.f32 %v692, %v698
        %v701 = vmul.f32 %v699, 1.442695
        %v702 = vpow.pop %v701
        %v703 = vmul.f32 %v700, 1.442695
        %v704 = vpow.pop %v703
        %v705 = vsel %vm693, %v702, 0.0
        %v706 = vsel %vm693, %v704, 0.0
        %v707 = vadd.f32 %v705, %v706
        %708 = vadd.xlane.f32.xlu0 %v707
        %v709 = vpop.xlane.xlu0 %708
        %v710 = vrcp.pop %v709
        %v711 = vlaneseq
        %v712 = vshrl.u32 %v711, 7
        %v713 = vsub.s32 0, %v712
        %v714 = vrot.slane %v702, %v713
        %v715 = vlaneseq
        %v716 = vshrl.u32 %v715, 7
        %v717 = vsub.s32 0, %v716
        %v718 = vrot.slane %v704, %v717
        %v721 = vcombine.low %v714, %v718
        %v723 = vmul.f32 %v372, %v721
        %v725 = vcombine.high %v723, %v723
        %v727 = vsel %vm458, %v723, 0.0
        %v728 = vsel %vm458, %v725, 0.0
        %v729 = vadd.f32 %v727, %v728
        %730 = vadd.xlane.f32.xlu0 %v729
        %v731 = vpop.xlane.xlu0 %730
        %v732 = vlaneseq
        %v733 = vshrl.u32 %v732, 7
        %v734 = vsub.s32 0, %v733
        %v735 = vrot.slane %v710, %v734
        %v736 = vmul.f32 %v731, %v735
        %v737 = vld [vmem:[%s6] sm:$0xf]
        %v738 = vld [vmem:[%s7] sm:$0xf]
        %v740 = vsel %vm454, %v737, 0
        %v743 = vsel %vm458, %v736, 0
        %745 = vmatprep.subr.mxu0 0.0
        %746 = vmatpush1.msra.mxu0 0.0
        %747 = vmatprep.subr.mxu0 0.0
        %748 = vmatpush1.msra.mxu0 0.0
        %749 = vmatprep.subr.mxu0 0.0
        %750 = vmatpush1.msra.mxu0 0.0
        %751 = vmatprep.subr.mxu0 0.0
        %752 = vmatpush1.msra.mxu0 0.0
        %753 = vmatprep.subr.mxu0 0.0
        %754 = vmatpush1.msra.mxu0 0.0
        %755 = vmatprep.subr.mxu0 0.0
        %756 = vmatpush1.msra.mxu0 0.0
        %757 = vmatprep.subr.mxu0 0.0
        %758 = vmatpush1.msra.mxu0 0.0
        %759 = vmatprep.subr.mxu0 0.0
        %760 = vmatpush1.msra.mxu0 0.0
        %761 = vmatprep.subr.mxu0 0.0
        %762 = vmatpush1.msra.mxu0 0.0
        %763 = vmatprep.subr.mxu0 0.0
        %764 = vmatpush1.msra.mxu0 0.0
        %765 = vmatprep.subr.mxu0 0.0
        %766 = vmatpush1.msra.mxu0 0.0
        %767 = vmatprep.subr.mxu0 0.0
        %768 = vmatpush1.msra.mxu0 0.0
        %769 = vmatprep.subr.mxu0 0.0
        %770 = vmatpush1.msra.mxu0 0.0
        %771 = vmatprep.subr.mxu0 0.0
        %772 = vmatpush1.msra.mxu0 0.0
        %773 = vmatprep.subr.mxu0 0.0
        %774 = vmatpush1.msra.mxu0 0.0
        %775 = vmatprep.subr.mxu0 0.0
        %776 = vmatpush1.msra.mxu0 %v743
        %777 = vmatprep.subr.mxu0 0.0
        %778 = vmatpush2.msra.mxu0 0.0
        %779 = vmatprep.subr.mxu0 0.0
        %780 = vmatpush2.msra.mxu0 0.0
        %781 = vmatprep.subr.mxu0 0.0
        %782 = vmatpush2.msra.mxu0 0.0
        %783 = vmatprep.subr.mxu0 0.0
        %784 = vmatpush2.msra.mxu0 0.0
        %785 = vmatprep.subr.mxu0 0.0
        %786 = vmatpush2.msra.mxu0 0.0
        %787 = vmatprep.subr.mxu0 0.0
        %788 = vmatpush2.msra.mxu0 0.0
        %789 = vmatprep.subr.mxu0 0.0
        %790 = vmatpush2.msra.mxu0 0.0
        %791 = vmatprep.subr.mxu0 0.0
        %792 = vmatpush2.msra.mxu0 0.0
        %793 = vmatprep.subr.mxu0 0.0
        %794 = vmatpush2.msra.mxu0 0.0
        %795 = vmatprep.subr.mxu0 0.0
        %796 = vmatpush2.msra.mxu0 0.0
        %797 = vmatprep.subr.mxu0 0.0
        %798 = vmatpush2.msra.mxu0 0.0
        %799 = vmatprep.subr.mxu0 0.0
        %800 = vmatpush2.msra.mxu0 0.0
        %801 = vmatprep.subr.mxu0 0.0
        %802 = vmatpush2.msra.mxu0 0.0
        %803 = vmatprep.subr.mxu0 0.0
        %804 = vmatpush2.msra.mxu0 0.0
        %805 = vmatprep.subr.mxu0 0.0
        %806 = vmatpush2.msra.mxu0 0.0
        %807 = vmatprep.subr.mxu0 0.0
        %808 = vmatpush2.msra.mxu0 0.0
        %809 = vmatprep.mubr.f32.mxu0 0.0
        %810 = vmatmul.mubr.f32.gmra.mxu0 %v740
        %v811 = vpop.f32.mrf.mxu0
        %v812 = vadd.f32 %v738, %v811
        %v813 = vpop.f32.mrf.mxu0
        %814 = vdwg.mxu0
        %v815 = vld [vmem:[%s8] sm:$0xf]
        %v816 = vld [vmem:[%s9] sm:$0xf]
        %v818 = vsel %vm454, %v815, 0
        %v821 = vsel %vm458, %v812, 0
        %823 = vmatprep.subr.mxu0 0.0
        %824 = vmatpush1.msra.mxu0 0.0
        %825 = vmatprep.subr.mxu0 0.0
        %826 = vmatpush1.msra.mxu0 0.0
        %827 = vmatprep.subr.mxu0 0.0
        %828 = vmatpush1.msra.mxu0 0.0
        %829 = vmatprep.subr.mxu0 0.0
        %830 = vmatpush1.msra.mxu0 0.0
        %831 = vmatprep.subr.mxu0 0.0
        %832 = vmatpush1.msra.mxu0 0.0
        %833 = vmatprep.subr.mxu0 0.0
        %834 = vmatpush1.msra.mxu0 0.0
        %835 = vmatprep.subr.mxu0 0.0
        %836 = vmatpush1.msra.mxu0 0.0
        %837 = vmatprep.subr.mxu0 0.0
        %838 = vmatpush1.msra.mxu0 0.0
        %839 = vmatprep.subr.mxu0 0.0
        %840 = vmatpush1.msra.mxu0 0.0
        %841 = vmatprep.subr.mxu0 0.0
        %842 = vmatpush1.msra.mxu0 0.0
        %843 = vmatprep.subr.mxu0 0.0
        %844 = vmatpush1.msra.mxu0 0.0
        %845 = vmatprep.subr.mxu0 0.0
        %846 = vmatpush1.msra.mxu0 0.0
        %847 = vmatprep.subr.mxu0 0.0
        %848 = vmatpush1.msra.mxu0 0.0
        %849 = vmatprep.subr.mxu0 0.0
        %850 = vmatpush1.msra.mxu0 0.0
        %851 = vmatprep.subr.mxu0 0.0
        %852 = vmatpush1.msra.mxu0 0.0
        %853 = vmatprep.subr.mxu0 0.0
        %854 = vmatpush1.msra.mxu0 %v821
        %855 = vmatprep.subr.mxu0 0.0
        %856 = vmatpush2.msra.mxu0 0.0
        %857 = vmatprep.subr.mxu0 0.0
        %858 = vmatpush2.msra.mxu0 0.0
        %859 = vmatprep.subr.mxu0 0.0
        %860 = vmatpush2.msra.mxu0 0.0
        %861 = vmatprep.subr.mxu0 0.0
        %862 = vmatpush2.msra.mxu0 0.0
        %863 = vmatprep.subr.mxu0 0.0
        %864 = vmatpush2.msra.mxu0 0.0
        %865 = vmatprep.subr.mxu0 0.0
        %866 = vmatpush2.msra.mxu0 0.0
        %867 = vmatprep.subr.mxu0 0.0
        %868 = vmatpush2.msra.mxu0 0.0
        %869 = vmatprep.subr.mxu0 0.0
        %870 = vmatpush2.msra.mxu0 0.0
        %871 = vmatprep.subr.mxu0 0.0
        %872 = vmatpush2.msra.mxu0 0.0
        %873 = vmatprep.subr.mxu0 0.0
        %874 = vmatpush2.msra.mxu0 0.0
        %875 = vmatprep.subr.mxu0 0.0
        %876 = vmatpush2.msra.mxu0 0.0
        %877 = vmatprep.subr.mxu0 0.0
        %878 = vmatpush2.msra.mxu0 0.0
        %879 = vmatprep.subr.mxu0 0.0
        %880 = vmatpush2.msra.mxu0 0.0
        %881 = vmatprep.subr.mxu0 0.0
        %882 = vmatpush2.msra.mxu0 0.0
        %883 = vmatprep.subr.mxu0 0.0
        %884 = vmatpush2.msra.mxu0 0.0
        %885 = vmatprep.subr.mxu0 0.0
        %886 = vmatpush2.msra.mxu0 0.0
        %887 = vmatprep.mubr.f32.mxu0 0.0
        %888 = vmatmul.mubr.f32.gmra.mxu0 %v818
        %v889 = vpop.f32.mrf.mxu0
        %v890 = vadd.f32 %v816, %v889
        %v891 = vpop.f32.mrf.mxu0
        %892 = vdwg.mxu0
        %894 = vset.pattern.permute.xlu0 0
        %895 = vperm.xlu0 %894, %v890
        %v896 = vpop.permute.xlu0 %895
        %v898 = vunpack.c.l.s4 839922192
        %v899 = vunpack.c.0.s8 %v898
        %v900 = vlaneseq
        %v901 = vshrl.u32 %v900, 7
        %v902 = vsub.s32 %v899, %v901
        %v903 = vrot.slane %v896, %v902
        %v905 = vadd.f32 %v372, %v903
        %906 = vst [vmem:[%s363] sm:$0xff] %v905
        %s907 = sand.u32 %s252, 1
        %s908 = scalar_lea.sflag [#allocation3], %s907
        %s909 = sand.u32 %s252, 1
        %s910 = smul.addr %s909, 8
        %s911 = scalar_lea.vmem [#allocation2], %s910
        // Predicated region
        $region61: #{tpu_custom_call.1} parent=59 // pred_check
          %p912 = pneg %p262
        $region62: #{tpu_custom_call.1} parent=59 // pred_check_branch
          %914 = sbr.rel (%p912) target = $region64
        $region63: #{tpu_custom_call.1} parent=59 // pred_region
          %s916 = ssub.s32 128, 128
          %917 = vsyncadd %s908, %s916
          %s918 = smul.addr %s24, 2
          %s919 = smul.addr %s918, 64
          %s920 = scalar_lea.hbm %s10, %s919
          %s922 = sshll.u32 %s911, 4
          %s923 = int_to_ptr.vmem [resolvable:$true] %s922
          %925 = dma.vmem_to_hbm [thread:$0]  %s923, 128, %s920, %s908
        $region64: #{tpu_custom_call.1} parent=59 // pred_fallthru
          _
      $region60: #{tpu_custom_call.1} parent=5 // pred_fallthru
        _
      %p926 = scmp.le.s32.totalorder 2, %s19
      // Predicated region
      $region65: #{tpu_custom_call.1} parent=5 // pred_check
        %p927 = pneg %p926
      $region66: #{tpu_custom_call.1} parent=5 // pred_check_branch
        %929 = sbr.rel (%p927) target = $region68
      $region67: #{tpu_custom_call.1} parent=5 // pred_region
        %s930 = ssub.s32 %s19, 2
        // Predicated region
        $region69: #{tpu_custom_call.1} parent=67 // pred_check
          %p931 = pneg %p268
        $region70: #{tpu_custom_call.1} parent=67 // pred_check_branch
          %933 = sbr.rel (%p931) target = $region72
        $region71: #{tpu_custom_call.1} parent=67 // pred_region
          %s934 = sand.u32 %s253, 1
          %s935 = scalar_lea.sflag [#allocation3], %s934
          %s936 = sand.u32 %s253, 1
          %s937 = smul.addr %s936, 8
          %s938 = scalar_lea.vmem [#allocation2], %s937
          %939 = dma.done %s935, 128
        $region72: #{tpu_custom_call.1} parent=67 // pred_fallthru
          _
      $region68: #{tpu_custom_call.1} parent=5 // pred_fallthru
        _
    $region6: #{tpu_custom_call.1} parent=1 // loop_footer
      %s23 = sadd.s32 1, %s19
    $region7: #{tpu_custom_call.1} parent=1 // loop_footer_branch
      %18 = sbr.rel target = $region3
    $region8: #{tpu_custom_call.1} parent=1 // loop_exit
      _
    %940 = vsyncpa [#allocation3], 1
    %s941 = scalar_lea.sflag [#allocation3], 1
    %942 = vsyncpa %s941, 1

</llo_original>
